<compile_context>
chip_gen: v7x
topology: tpu7x:2x2x1
jax: 0.10.0
libtpu: 0.0.40
codegen_flags: <defaults>
</compile_context>

<pallas_src>
import jax
import jax.numpy as jnp
from jax import lax
from jax.experimental import pallas as pl
from jax.experimental.pallas import tpu as pltpu


def _vgae_kernel(adj_ref, feat_ref, noise_ref,
                 ws_ref, bs_ref,
                 wm_ref, bm_ref,
                 wl_ref, bl_ref,
                 out_ref):
    f32 = jnp.float32
    bf16 = jnp.bfloat16

    adj = adj_ref[...]                      # (BN, BN) f32 block-diagonal adjacency
    bn = adj.shape[0]

    # --- normalized self-loop adjacency, built once and reused by all three layers ---
    # off-diagonal blocks are zero, so the row sum equals the per-graph degree.
    deg = jnp.sum(adj, axis=-1, keepdims=True)                     # (BN, 1)
    inv = pl.reciprocal(deg + 1.0, approx=True)                    # EUP, not VALU
    row = lax.broadcasted_iota(jnp.int32, (bn, bn), 0)
    col = lax.broadcasted_iota(jnp.int32, (bn, bn), 1)
    eye = (row == col).astype(f32)
    a_hat = ((adj + eye) * inv).astype(bf16)                       # (BN, BN) bf16

    # --- conv_shared + ReLU (conv_dropout_1: identity in eval mode) ---
    agg0 = jnp.dot(a_hat, feat_ref[...], preferred_element_type=f32)       # (BN, F)
    h = jnp.dot(agg0.astype(bf16), ws_ref[...],
                preferred_element_type=f32) + bs_ref[...]                   # (BN, H1)
    h = jnp.maximum(h, 0.0)

    # --- conv_mean / conv_log_std share the neighbor aggregation ---
    agg = jnp.dot(a_hat, h.astype(bf16), preferred_element_type=f32).astype(bf16)
    h_mean = jnp.dot(agg, wm_ref[...], preferred_element_type=f32) + bm_ref[...]
    h_log_std = jnp.dot(agg, wl_ref[...], preferred_element_type=f32) + bl_ref[...]

    # --- reparameterization: z = mu + eps * exp(log_std) ---
    z = h_mean + noise_ref[...] * jnp.exp(h_log_std)               # (BN, H2) f32

    # --- inner-product decoder + sigmoid (contracting dims (1,1): no z.T relayout) ---
    zb = z.astype(bf16)
    recon = lax.dot_general(zb, zb, (((1,), (1,)), ((), ())),
                            preferred_element_type=f32)            # (BN, BN) f32
    out_ref[...] = pl.reciprocal(1.0 + jnp.exp(-recon), approx=True)


def vgae_forward(adj, features, noise, params):
    """adj: (B,N,N) f32, features: (B,N,F) f32, noise: (B,N,H2) f32.

    Weights are stored (in, out); biases are (1, out). Returns (B,N,N) f32."""
    B, N, _ = adj.shape
    F = features.shape[-1]
    H2 = noise.shape[-1]
    BN = B * N

    bf16 = jnp.bfloat16
    # Layout prep in the wrapper (pure XLA, tiny arrays):
    #   block-diagonal adjacency (BN, BN), flattened activations (BN, ·), bf16 weights.
    eye_b = jnp.eye(B, dtype=adj.dtype)
    adj_blk = (adj[:, :, None, :] * eye_b[:, None, :, None]).reshape(BN, BN)
    feat_flat = features.reshape(BN, F).astype(bf16)
    noise_flat = noise.reshape(BN, H2)

    w_s = params["w_shared"].astype(bf16)
    w_m = params["w_mean"].astype(bf16)
    w_l = params["w_log_std"].astype(bf16)
    b_s, b_m, b_l = params["b_shared"], params["b_mean"], params["b_log_std"]

    full = lambda shape: pl.BlockSpec(shape, lambda i: (0, 0))

    out_full = pl.pallas_call(
        _vgae_kernel,
        out_shape=jax.ShapeDtypeStruct((BN, BN), jnp.float32),
        grid=(1,),                          # whole batch in one step (fits VMEM easily)
        in_specs=[
            full((BN, BN)),                 # block-diagonal adjacency
            full((BN, F)),                  # features, bf16
            full((BN, H2)),                 # reparameterization noise
            full(w_s.shape), full(b_s.shape),
            full(w_m.shape), full(b_m.shape),
            full(w_l.shape), full(b_l.shape),
        ],
        out_specs=full((BN, BN)),           # lane-dense (last dim = 128) output slab
        compiler_params=pltpu.CompilerParams(dimension_semantics=("arbitrary",)),
    )(adj_blk, feat_flat, noise_flat, w_s, b_s, w_m, b_m, w_l, b_l)

    # Extract the per-graph diagonal blocks (cross-graph inner products are discarded).
    idx = jnp.arange(B)
    return out_full.reshape(B, N, B, N)[idx, :, idx, :]


def reference_forward(adj, features, noise, params):
    """Pure-JAX reference with the same bf16 matmul casts as the kernel."""
    f32, bf16 = jnp.float32, jnp.bfloat16
    N = adj.shape[-1]
    deg = jnp.sum(adj, axis=-1, keepdims=True)
    eye = jnp.eye(N, dtype=f32)
    a_hat = ((adj + eye[None]) / (deg + 1.0)).astype(bf16)

    agg0 = jnp.einsum("bnm,bmf->bnf", a_hat, features.astype(bf16),
                      preferred_element_type=f32)
    h = jnp.einsum("bnf,fh->bnh", agg0.astype(bf16),
                   params["w_shared"].astype(bf16),
                   preferred_element_type=f32) + params["b_shared"]
    h = jnp.maximum(h, 0.0)

    agg = jnp.einsum("bnm,bmh->bnh", a_hat, h.astype(bf16),
                     preferred_element_type=f32).astype(bf16)
    h_mean = jnp.einsum("bnh,hk->bnk", agg, params["w_mean"].astype(bf16),
                        preferred_element_type=f32) + params["b_mean"]
    h_log_std = jnp.einsum("bnh,hk->bnk", agg, params["w_log_std"].astype(bf16),
                           preferred_element_type=f32) + params["b_log_std"]

    z = h_mean + noise * jnp.exp(h_log_std)
    zb = z.astype(bf16)
    recon = jnp.einsum("bnk,bmk->bnm", zb, zb, preferred_element_type=f32)
    return jax.nn.sigmoid(recon)


def init_params(key, input_dim, hidden_dim_1, hidden_dim_2):
    ks = jax.random.split(key, 6)
    s = 0.1
    return {
        # DenseSAGEConv fc layers, stored as (in, out); biases as (1, out)
        "w_shared": s * jax.random.normal(ks[0], (input_dim, hidden_dim_1), jnp.float32),
        "b_shared": s * jax.random.normal(ks[1], (1, hidden_dim_1), jnp.float32),
        "w_mean": s * jax.random.normal(ks[2], (hidden_dim_1, hidden_dim_2), jnp.float32),
        "b_mean": s * jax.random.normal(ks[3], (1, hidden_dim_2), jnp.float32),
        "w_log_std": s * jax.random.normal(ks[4], (hidden_dim_1, hidden_dim_2), jnp.float32),
        "b_log_std": s * jax.random.normal(ks[5], (1, hidden_dim_2), jnp.float32),
    }


if __name__ == "__main__":
    B = 8             # batch of graphs, packed into one (B*N, B*N) block-diagonal step
    N = 16            # nodes per graph  -> B*N = 128 rows (MXU / vreg aligned)
    INPUT_DIM = 8
    HIDDEN_1 = 32
    HIDDEN_2 = 32

    key = jax.random.PRNGKey(0)
    k_adj, k_feat, k_noise, k_param = jax.random.split(key, 4)

    # symmetric 0/1 adjacency matrices (deterministic)
    a = (jax.random.uniform(k_adj, (B, N, N)) > 0.6).astype(jnp.float32)
    adj = jnp.maximum(a, jnp.transpose(a, (0, 2, 1)))
    features = jax.random.normal(k_feat, (B, N, INPUT_DIM), jnp.float32)
    noise = jax.random.normal(k_noise, (B, N, HIDDEN_2), jnp.float32)

    params = init_params(k_param, INPUT_DIM, HIDDEN_1, HIDDEN_2)

    out = vgae_forward(adj, features, noise, params)
    out = jax.block_until_ready(out)

    ref = reference_forward(adj, features, noise, params)
    assert out.shape == (B, N, N)
    assert bool(jnp.all(jnp.isfinite(out)))
    max_err = float(jnp.max(jnp.abs(out - ref)))
    assert jnp.allclose(out, ref, atol=3e-2, rtol=3e-2), max_err

    print("KERNEL_OK")
</pallas_src>

<mosaic_0001>
module attributes {stable_mosaic.version = 11 : i64} {
  func.func @_vgae_kernel(%arg0: i32, %arg1: memref<128x128xf32, #tpu.memory_space<vmem>>, %arg2: memref<128x8xbf16, #tpu.memory_space<vmem>>, %arg3: memref<128x32xf32, #tpu.memory_space<vmem>>, %arg4: memref<8x32xbf16, #tpu.memory_space<vmem>>, %arg5: memref<1x32xf32, #tpu.memory_space<vmem>>, %arg6: memref<32x32xbf16, #tpu.memory_space<vmem>>, %arg7: memref<1x32xf32, #tpu.memory_space<vmem>>, %arg8: memref<32x32xbf16, #tpu.memory_space<vmem>>, %arg9: memref<1x32xf32, #tpu.memory_space<vmem>>, %arg10: memref<128x128xf32, #tpu.memory_space<vmem>>) attributes {dimension_semantics = [#tpu.dimension_semantics<arbitrary>], iteration_bounds = array<i64: 1>, scalar_prefetch = 0 : i64, scratch_operands = 0 : i64, tpu.core_type = #tpu.core_type<tc>, window_params = [{pipeline_mode = #tpu.pipeline_mode<synchronous>, transform_indices = @transform_0, window_bounds = array<i64: 128, 128>}, {pipeline_mode = #tpu.pipeline_mode<synchronous>, transform_indices = @transform_1, window_bounds = array<i64: 128, 8>}, {pipeline_mode = #tpu.pipeline_mode<synchronous>, transform_indices = @transform_2, window_bounds = array<i64: 128, 32>}, {pipeline_mode = #tpu.pipeline_mode<synchronous>, transform_indices = @transform_3, window_bounds = array<i64: 8, 32>}, {pipeline_mode = #tpu.pipeline_mode<synchronous>, transform_indices = @transform_4, window_bounds = array<i64: 1, 32>}, {pipeline_mode = #tpu.pipeline_mode<synchronous>, transform_indices = @transform_5, window_bounds = array<i64: 32, 32>}, {pipeline_mode = #tpu.pipeline_mode<synchronous>, transform_indices = @transform_6, window_bounds = array<i64: 1, 32>}, {pipeline_mode = #tpu.pipeline_mode<synchronous>, transform_indices = @transform_7, window_bounds = array<i64: 32, 32>}, {pipeline_mode = #tpu.pipeline_mode<synchronous>, transform_indices = @transform_8, window_bounds = array<i64: 1, 32>}, {pipeline_mode = #tpu.pipeline_mode<synchronous>, transform_indices = @transform_9, window_bounds = array<i64: 128, 128>}]} {
    %c0 = arith.constant 0 : index
    %c0_0 = arith.constant 0 : index
    %0 = vector.load %arg1[%c0, %c0_0] : memref<128x128xf32, #tpu.memory_space<vmem>>, vector<128x128xf32>
    %cst = arith.constant dense<0.000000e+00> : vector<128xf32>
    %1 = vector.multi_reduction <add>, %0, %cst [1] : vector<128x128xf32> to vector<128xf32>
    %2 = vector.shape_cast %1 : vector<128xf32> to vector<128x1xf32>
    %cst_1 = arith.constant 1.000000e+00 : f32
    %3 = vector.broadcast %cst_1 : f32 to vector<128x1xf32>
    %4 = arith.addf %2, %3 : vector<128x1xf32>
    %5 = tpu.reciprocal %4 {approx = true} : vector<128x1xf32> -> vector<128x1xf32>
    %6 = tpu.iota {dimensions = array<i32: 0>} : vector<128x128xi32>
    %7 = tpu.iota {dimensions = array<i32: 1>} : vector<128x128xi32>
    %8 = arith.cmpi eq, %6, %7 : vector<128x128xi32>
    %9 = arith.extui %8 : vector<128x128xi1> to vector<128x128xi32>
    %10 = arith.sitofp %9 : vector<128x128xi32> to vector<128x128xf32>
    %11 = arith.addf %0, %10 : vector<128x128xf32>
    %12 = vector.broadcast %5 : vector<128x1xf32> to vector<128x128xf32>
    %13 = arith.mulf %11, %12 : vector<128x128xf32>
    %14 = arith.truncf %13 : vector<128x128xf32> to vector<128x128xbf16>
    %c0_2 = arith.constant 0 : index
    %c0_3 = arith.constant 0 : index
    %15 = vector.load %arg2[%c0_2, %c0_3] : memref<128x8xbf16, #tpu.memory_space<vmem>>, vector<128x8xbf16>
    %cst_4 = arith.constant dense<0.000000e+00> : vector<128x8xf32>
    %16 = tpu.matmul %14, %15, %cst_4 {dimension_numbers = #tpu.dot_dimension_numbers<[1], [0], [0], [1], [0, 0, 1, 1], [], []>} : vector<128x128xbf16>, vector<128x8xbf16>, vector<128x8xf32> -> vector<128x8xf32>
    %17 = arith.truncf %16 : vector<128x8xf32> to vector<128x8xbf16>
    %c0_5 = arith.constant 0 : index
    %c0_6 = arith.constant 0 : index
    %18 = vector.load %arg4[%c0_5, %c0_6] : memref<8x32xbf16, #tpu.memory_space<vmem>>, vector<8x32xbf16>
    %cst_7 = arith.constant dense<0.000000e+00> : vector<128x32xf32>
    %19 = tpu.matmul %17, %18, %cst_7 {dimension_numbers = #tpu.dot_dimension_numbers<[1], [0], [0], [1], [0, 0, 1, 1], [], []>} : vector<128x8xbf16>, vector<8x32xbf16>, vector<128x32xf32> -> vector<128x32xf32>
    %c0_8 = arith.constant 0 : index
    %c0_9 = arith.constant 0 : index
    %20 = vector.load %arg5[%c0_8, %c0_9] : memref<1x32xf32, #tpu.memory_space<vmem>>, vector<1x32xf32>
    %21 = vector.broadcast %20 : vector<1x32xf32> to vector<128x32xf32>
    %22 = arith.addf %19, %21 : vector<128x32xf32>
    %cst_10 = arith.constant 0.000000e+00 : f32
    %23 = vector.broadcast %cst_10 : f32 to vector<128x32xf32>
    %24 = arith.maximumf %22, %23 : vector<128x32xf32>
    %25 = arith.truncf %24 : vector<128x32xf32> to vector<128x32xbf16>
    %cst_11 = arith.constant dense<0.000000e+00> : vector<128x32xf32>
    %26 = tpu.matmul %14, %25, %cst_11 {dimension_numbers = #tpu.dot_dimension_numbers<[1], [0], [0], [1], [0, 0, 1, 1], [], []>} : vector<128x128xbf16>, vector<128x32xbf16>, vector<128x32xf32> -> vector<128x32xf32>
    %27 = arith.truncf %26 : vector<128x32xf32> to vector<128x32xbf16>
    %c0_12 = arith.constant 0 : index
    %c0_13 = arith.constant 0 : index
    %28 = vector.load %arg6[%c0_12, %c0_13] : memref<32x32xbf16, #tpu.memory_space<vmem>>, vector<32x32xbf16>
    %cst_14 = arith.constant dense<0.000000e+00> : vector<128x32xf32>
    %29 = tpu.matmul %27, %28, %cst_14 {dimension_numbers = #tpu.dot_dimension_numbers<[1], [0], [0], [1], [0, 0, 1, 1], [], []>} : vector<128x32xbf16>, vector<32x32xbf16>, vector<128x32xf32> -> vector<128x32xf32>
    %c0_15 = arith.constant 0 : index
    %c0_16 = arith.constant 0 : index
    %30 = vector.load %arg7[%c0_15, %c0_16] : memref<1x32xf32, #tpu.memory_space<vmem>>, vector<1x32xf32>
    %31 = vector.broadcast %30 : vector<1x32xf32> to vector<128x32xf32>
    %32 = arith.addf %29, %31 : vector<128x32xf32>
    %c0_17 = arith.constant 0 : index
    %c0_18 = arith.constant 0 : index
    %33 = vector.load %arg8[%c0_17, %c0_18] : memref<32x32xbf16, #tpu.memory_space<vmem>>, vector<32x32xbf16>
    %cst_19 = arith.constant dense<0.000000e+00> : vector<128x32xf32>
    %34 = tpu.matmul %27, %33, %cst_19 {dimension_numbers = #tpu.dot_dimension_numbers<[1], [0], [0], [1], [0, 0, 1, 1], [], []>} : vector<128x32xbf16>, vector<32x32xbf16>, vector<128x32xf32> -> vector<128x32xf32>
    %c0_20 = arith.constant 0 : index
    %c0_21 = arith.constant 0 : index
    %35 = vector.load %arg9[%c0_20, %c0_21] : memref<1x32xf32, #tpu.memory_space<vmem>>, vector<1x32xf32>
    %36 = vector.broadcast %35 : vector<1x32xf32> to vector<128x32xf32>
    %37 = arith.addf %34, %36 : vector<128x32xf32>
    %c0_22 = arith.constant 0 : index
    %c0_23 = arith.constant 0 : index
    %38 = vector.load %arg3[%c0_22, %c0_23] : memref<128x32xf32, #tpu.memory_space<vmem>>, vector<128x32xf32>
    %39 = math.exp %37 : vector<128x32xf32>
    %40 = arith.mulf %38, %39 : vector<128x32xf32>
    %41 = arith.addf %32, %40 : vector<128x32xf32>
    %42 = arith.truncf %41 : vector<128x32xf32> to vector<128x32xbf16>
    %cst_24 = arith.constant dense<0.000000e+00> : vector<128x128xf32>
    %43 = tpu.matmul %42, %42, %cst_24 {dimension_numbers = #tpu.dot_dimension_numbers<[1], [1], [0], [0], [0, 0, 1, 0], [], []>} : vector<128x32xbf16>, vector<128x32xbf16>, vector<128x128xf32> -> vector<128x128xf32>
    %cst_25 = arith.constant 0.000000e+00 : f32
    %44 = vector.broadcast %cst_25 : f32 to vector<128x128xf32>
    %45 = arith.subf %44, %43 : vector<128x128xf32>
    %46 = math.exp %45 : vector<128x128xf32>
    %cst_26 = arith.constant 1.000000e+00 : f32
    %47 = vector.broadcast %cst_26 : f32 to vector<128x128xf32>
    %48 = arith.addf %47, %46 : vector<128x128xf32>
    %49 = tpu.reciprocal %48 {approx = true} : vector<128x128xf32> -> vector<128x128xf32>
    %c0_27 = arith.constant 0 : index
    %c0_28 = arith.constant 0 : index
    %50 = vector.load %arg10[%c0_27, %c0_28] : memref<128x128xf32, #tpu.memory_space<vmem>>, vector<128x128xf32>
    tpu.vector_store %arg10[%c0_27, %c0_28], %49 {strides = array<i32>} : memref<128x128xf32, #tpu.memory_space<vmem>>, vector<128x128xf32>,
    return
  }
  func.func @transform_0(%arg0: i32) -> (i32, i32) {
    %c0_i32 = arith.constant 0 : i32
    %c0_i32_0 = arith.constant 0 : i32
    %c0_i32_1 = arith.constant 0 : i32
    return %c0_i32, %c0_i32_0 : i32, i32
  }
  func.func @transform_1(%arg0: i32) -> (i32, i32) {
    %c0_i32 = arith.constant 0 : i32
    %c0_i32_0 = arith.constant 0 : i32
    %c0_i32_1 = arith.constant 0 : i32
    return %c0_i32, %c0_i32_0 : i32, i32
  }
  func.func @transform_2(%arg0: i32) -> (i32, i32) {
    %c0_i32 = arith.constant 0 : i32
    %c0_i32_0 = arith.constant 0 : i32
    %c0_i32_1 = arith.constant 0 : i32
    return %c0_i32, %c0_i32_0 : i32, i32
  }
  func.func @transform_3(%arg0: i32) -> (i32, i32) {
    %c0_i32 = arith.constant 0 : i32
    %c0_i32_0 = arith.constant 0 : i32
    %c0_i32_1 = arith.constant 0 : i32
    return %c0_i32, %c0_i32_0 : i32, i32
  }
  func.func @transform_4(%arg0: i32) -> (i32, i32) {
    %c0_i32 = arith.constant 0 : i32
    %c0_i32_0 = arith.constant 0 : i32
    %c0_i32_1 = arith.constant 0 : i32
    return %c0_i32, %c0_i32_0 : i32, i32
  }
  func.func @transform_5(%arg0: i32) -> (i32, i32) {
    %c0_i32 = arith.constant 0 : i32
    %c0_i32_0 = arith.constant 0 : i32
    %c0_i32_1 = arith.constant 0 : i32
    return %c0_i32, %c0_i32_0 : i32, i32
  }
  func.func @transform_6(%arg0: i32) -> (i32, i32) {
    %c0_i32 = arith.constant 0 : i32
    %c0_i32_0 = arith.constant 0 : i32
    %c0_i32_1 = arith.constant 0 : i32
    return %c0_i32, %c0_i32_0 : i32, i32
  }
  func.func @transform_7(%arg0: i32) -> (i32, i32) {
    %c0_i32 = arith.constant 0 : i32
    %c0_i32_0 = arith.constant 0 : i32
    %c0_i32_1 = arith.constant 0 : i32
    return %c0_i32, %c0_i32_0 : i32, i32
  }
  func.func @transform_8(%arg0: i32) -> (i32, i32) {
    %c0_i32 = arith.constant 0 : i32
    %c0_i32_0 = arith.constant 0 : i32
    %c0_i32_1 = arith.constant 0 : i32
    return %c0_i32, %c0_i32_0 : i32, i32
  }
  func.func @transform_9(%arg0: i32) -> (i32, i32) {
    %c0_i32 = arith.constant 0 : i32
    %c0_i32_0 = arith.constant 0 : i32
    %c0_i32_1 = arith.constant 0 : i32
    return %c0_i32, %c0_i32_0 : i32, i32
  }
}

</mosaic_0001>

<llo_original>
// kernel: tpu_custom_call.1
$region0: #{tpu_custom_call.1}
  #allocation0 [shape = 'u32[]', space=smem, size = 0x4, offset = 0x4, fixed_abs, tag = 'smem constant byte address 0x4 - core index']
  #allocation1 [shape = 'u32[144,128]{1,0:T(1,128)}', space=vmem, size = 0x12000, scoped, tag = 'internal scratch']
  %s0 = inlined_call_operand.vmem [shape: f32[128,128], index: 0, kind: input, shape index: {}]
  %s1 = inlined_call_operand.vmem [shape: bf16[128,8], index: 1, kind: input, shape index: {}]
  %s2 = inlined_call_operand.vmem [shape: f32[128,32], index: 2, kind: input, shape index: {}]
  %s3 = inlined_call_operand.vmem [shape: bf16[8,32], index: 3, kind: input, shape index: {}]
  %s4 = inlined_call_operand.vmem [shape: f32[1,32], index: 4, kind: input, shape index: {}]
  %s5 = inlined_call_operand.vmem [shape: bf16[32,32], index: 5, kind: input, shape index: {}]
  %s6 = inlined_call_operand.vmem [shape: f32[1,32], index: 6, kind: input, shape index: {}]
  %s7 = inlined_call_operand.vmem [shape: bf16[32,32], index: 7, kind: input, shape index: {}]
  %s8 = inlined_call_operand.vmem [shape: f32[1,32], index: 8, kind: input, shape index: {}]
  %s9 = inlined_call_operand.hbm [shape: f32[128,128], index: 9, kind: output, shape index: {}]
  %s10 = sld [smem:[#allocation0]]
  $region46: #{tpu_custom_call.1} parent=0
    _
  %s12 = ssub.s32 1, %s10
  %s13 = scalar_select 0, %s12, %s10
  $region1: #{tpu_custom_call.1} parent=0
    #allocation2 [shape = 'u8[65536]{0}', space=vmem, size = 0x10000, scoped, tag = 'output window, operand 0, single buffered']
    #allocation3 [shape = 's32[1]{0}', space=sflag, size = 0x4, scoped, tag = 'scoped memory for tpu_custom_call.1']
    %14 = vsyncpa [#allocation3], 0
    // Predicated region
    $region2: #{tpu_custom_call.1} parent=1 // pred_check
      _
    $region3: #{tpu_custom_call.1} parent=1 // pred_check_branch
      %16 = sbr.rel (0) target = $region5
    $region4: #{tpu_custom_call.1} parent=1 // pred_region
      _
    $region5: #{tpu_custom_call.1} parent=1 // pred_fallthru
      _
    // Predicated region
    $region6: #{tpu_custom_call.1} parent=1 // pred_check
      _
    $region7: #{tpu_custom_call.1} parent=1 // pred_check_branch
      %18 = sbr.rel (0) target = $region9
    $region8: #{tpu_custom_call.1} parent=1 // pred_region
      _
    $region9: #{tpu_custom_call.1} parent=1 // pred_fallthru
      _
    // Predicated region
    $region10: #{tpu_custom_call.1} parent=1 // pred_check
      _
    $region11: #{tpu_custom_call.1} parent=1 // pred_check_branch
      %20 = sbr.rel (0) target = $region13
    $region12: #{tpu_custom_call.1} parent=1 // pred_region
      _
    $region13: #{tpu_custom_call.1} parent=1 // pred_fallthru
      _
    // Predicated region
    $region14: #{tpu_custom_call.1} parent=1 // pred_check
      _
    $region15: #{tpu_custom_call.1} parent=1 // pred_check_branch
      %22 = sbr.rel (0) target = $region17
    $region16: #{tpu_custom_call.1} parent=1 // pred_region
      _
    $region17: #{tpu_custom_call.1} parent=1 // pred_fallthru
      _
    // Predicated region
    $region18: #{tpu_custom_call.1} parent=1 // pred_check
      _
    $region19: #{tpu_custom_call.1} parent=1 // pred_check_branch
      %24 = sbr.rel (0) target = $region21
    $region20: #{tpu_custom_call.1} parent=1 // pred_region
      _
    $region21: #{tpu_custom_call.1} parent=1 // pred_fallthru
      _
    // Predicated region
    $region22: #{tpu_custom_call.1} parent=1 // pred_check
      _
    $region23: #{tpu_custom_call.1} parent=1 // pred_check_branch
      %26 = sbr.rel (0) target = $region25
    $region24: #{tpu_custom_call.1} parent=1 // pred_region
      _
    $region25: #{tpu_custom_call.1} parent=1 // pred_fallthru
      _
    // Predicated region
    $region26: #{tpu_custom_call.1} parent=1 // pred_check
      _
    $region27: #{tpu_custom_call.1} parent=1 // pred_check_branch
      %28 = sbr.rel (0) target = $region29
    $region28: #{tpu_custom_call.1} parent=1 // pred_region
      _
    $region29: #{tpu_custom_call.1} parent=1 // pred_fallthru
      _
    // Predicated region
    $region30: #{tpu_custom_call.1} parent=1 // pred_check
      _
    $region31: #{tpu_custom_call.1} parent=1 // pred_check_branch
      %30 = sbr.rel (0) target = $region33
    $region32: #{tpu_custom_call.1} parent=1 // pred_region
      _
    $region33: #{tpu_custom_call.1} parent=1 // pred_fallthru
      _
    // Predicated region
    $region34: #{tpu_custom_call.1} parent=1 // pred_check
      _
    $region35: #{tpu_custom_call.1} parent=1 // pred_check_branch
      %32 = sbr.rel (0) target = $region37
    $region36: #{tpu_custom_call.1} parent=1 // pred_region
      _
    $region37: #{tpu_custom_call.1} parent=1 // pred_fallthru
      _
    %v34 = vld [vmem:[%s0] sm:$0xff]
    %v35 = vld [vmem:[%s0 + $0x8] sm:$0xff]
    %v36 = vld [vmem:[%s0 + $0x10] sm:$0xff]
    %v37 = vld [vmem:[%s0 + $0x18] sm:$0xff]
    %v38 = vld [vmem:[%s0 + $0x20] sm:$0xff]
    %v39 = vld [vmem:[%s0 + $0x28] sm:$0xff]
    %v40 = vld [vmem:[%s0 + $0x30] sm:$0xff]
    %v41 = vld [vmem:[%s0 + $0x38] sm:$0xff]
    %v42 = vld [vmem:[%s0 + $0x40] sm:$0xff]
    %v43 = vld [vmem:[%s0 + $0x48] sm:$0xff]
    %v44 = vld [vmem:[%s0 + $0x50] sm:$0xff]
    %v45 = vld [vmem:[%s0 + $0x58] sm:$0xff]
    %v46 = vld [vmem:[%s0 + $0x60] sm:$0xff]
    %v47 = vld [vmem:[%s0 + $0x68] sm:$0xff]
    %v48 = vld [vmem:[%s0 + $0x70] sm:$0xff]
    %v49 = vld [vmem:[%s0 + $0x78] sm:$0xff]
    %50 = vadd.xlane.f32.xlu0 %v34
    %v51 = vpop.xlane.xlu0 %50
    %52 = vadd.xlane.f32.xlu0 %v35
    %v53 = vpop.xlane.xlu0 %52
    %54 = vadd.xlane.f32.xlu0 %v36
    %v55 = vpop.xlane.xlu0 %54
    %56 = vadd.xlane.f32.xlu0 %v37
    %v57 = vpop.xlane.xlu0 %56
    %58 = vadd.xlane.f32.xlu0 %v38
    %v59 = vpop.xlane.xlu0 %58
    %60 = vadd.xlane.f32.xlu0 %v39
    %v61 = vpop.xlane.xlu0 %60
    %62 = vadd.xlane.f32.xlu0 %v40
    %v63 = vpop.xlane.xlu0 %62
    %64 = vadd.xlane.f32.xlu0 %v41
    %v65 = vpop.xlane.xlu0 %64
    %66 = vadd.xlane.f32.xlu0 %v42
    %v67 = vpop.xlane.xlu0 %66
    %68 = vadd.xlane.f32.xlu0 %v43
    %v69 = vpop.xlane.xlu0 %68
    %70 = vadd.xlane.f32.xlu0 %v44
    %v71 = vpop.xlane.xlu0 %70
    %72 = vadd.xlane.f32.xlu0 %v45
    %v73 = vpop.xlane.xlu0 %72
    %74 = vadd.xlane.f32.xlu0 %v46
    %v75 = vpop.xlane.xlu0 %74
    %76 = vadd.xlane.f32.xlu0 %v47
    %v77 = vpop.xlane.xlu0 %76
    %78 = vadd.xlane.f32.xlu0 %v48
    %v79 = vpop.xlane.xlu0 %78
    %80 = vadd.xlane.f32.xlu0 %v49
    %v81 = vpop.xlane.xlu0 %80
    %v82 = vadd.f32 %v51, 1.0
    %v83 = vadd.f32 %v53, 1.0
    %v84 = vadd.f32 %v55, 1.0
    %v85 = vadd.f32 %v57, 1.0
    %v86 = vadd.f32 %v59, 1.0
    %v87 = vadd.f32 %v61, 1.0
    %v88 = vadd.f32 %v63, 1.0
    %v89 = vadd.f32 %v65, 1.0
    %v90 = vadd.f32 %v67, 1.0
    %v91 = vadd.f32 %v69, 1.0
    %v92 = vadd.f32 %v71, 1.0
    %v93 = vadd.f32 %v73, 1.0
    %v94 = vadd.f32 %v75, 1.0
    %v95 = vadd.f32 %v77, 1.0
    %v96 = vadd.f32 %v79, 1.0
    %v97 = vadd.f32 %v81, 1.0
    %v98 = vrcp.pop %v82
    %v99 = vrcp.pop %v83
    %v100 = vrcp.pop %v84
    %v101 = vrcp.pop %v85
    %v102 = vrcp.pop %v86
    %v103 = vrcp.pop %v87
    %v104 = vrcp.pop %v88
    %v105 = vrcp.pop %v89
    %v106 = vrcp.pop %v90
    %v107 = vrcp.pop %v91
    %v108 = vrcp.pop %v92
    %v109 = vrcp.pop %v93
    %v110 = vrcp.pop %v94
    %v111 = vrcp.pop %v95
    %v112 = vrcp.pop %v96
    %v113 = vrcp.pop %v97
    %v114 = vlaneseq
    %v115 = vshrl.u32 %v114, 7
    %v116 = vadd.s32 %v115, 8
    %v117 = vadd.s32 %v115, 16
    %v118 = vadd.s32 %v115, 24
    %v119 = vadd.s32 %v115, 32
    %v120 = vadd.s32 %v115, 40
    %v121 = vadd.s32 %v115, 48
    %v122 = vadd.s32 %v115, 56
    %v123 = vadd.s32 %v115, 64
    %v124 = vadd.s32 %v115, 72
    %v125 = vadd.s32 %v115, 80
    %v126 = vadd.s32 %v115, 88
    %v127 = vadd.s32 %v115, 96
    %v128 = vadd.s32 %v115, 104
    %v129 = vadd.s32 %v115, 112
    %v130 = vadd.s32 %v115, 120
    %v131 = vlaneseq
    %v132 = vand.u32 %v131, 127
    %vm133 = vcmp.eq.s32.totalorder %v115, %v132
    %vm134 = vcmp.eq.s32.totalorder %v116, %v132
    %vm135 = vcmp.eq.s32.totalorder %v117, %v132
    %vm136 = vcmp.eq.s32.totalorder %v118, %v132
    %vm137 = vcmp.eq.s32.totalorder %v119, %v132
    %vm138 = vcmp.eq.s32.totalorder %v120, %v132
    %vm139 = vcmp.eq.s32.totalorder %v121, %v132
    %vm140 = vcmp.eq.s32.totalorder %v122, %v132
    %vm141 = vcmp.eq.s32.totalorder %v123, %v132
    %vm142 = vcmp.eq.s32.totalorder %v124, %v132
    %vm143 = vcmp.eq.s32.totalorder %v125, %v132
    %vm144 = vcmp.eq.s32.totalorder %v126, %v132
    %vm145 = vcmp.eq.s32.totalorder %v127, %v132
    %vm146 = vcmp.eq.s32.totalorder %v128, %v132
    %vm147 = vcmp.eq.s32.totalorder %v129, %v132
    %vm148 = vcmp.eq.s32.totalorder %v130, %v132
    %v149 = vsel %vm133, 1, 0
    %v150 = vsel %vm134, 1, 0
    %v151 = vsel %vm135, 1, 0
    %v152 = vsel %vm136, 1, 0
    %v153 = vsel %vm137, 1, 0
    %v154 = vsel %vm138, 1, 0
    %v155 = vsel %vm139, 1, 0
    %v156 = vsel %vm140, 1, 0
    %v157 = vsel %vm141, 1, 0
    %v158 = vsel %vm142, 1, 0
    %v159 = vsel %vm143, 1, 0
    %v160 = vsel %vm144, 1, 0
    %v161 = vsel %vm145, 1, 0
    %v162 = vsel %vm146, 1, 0
    %v163 = vsel %vm147, 1, 0
    %v164 = vsel %vm148, 1, 0
    %v165 = vcvt.s32.f32 %v149
    %v166 = vcvt.s32.f32 %v150
    %v167 = vcvt.s32.f32 %v151
    %v168 = vcvt.s32.f32 %v152
    %v169 = vcvt.s32.f32 %v153
    %v170 = vcvt.s32.f32 %v154
    %v171 = vcvt.s32.f32 %v155
    %v172 = vcvt.s32.f32 %v156
    %v173 = vcvt.s32.f32 %v157
    %v174 = vcvt.s32.f32 %v158
    %v175 = vcvt.s32.f32 %v159
    %v176 = vcvt.s32.f32 %v160
    %v177 = vcvt.s32.f32 %v161
    %v178 = vcvt.s32.f32 %v162
    %v179 = vcvt.s32.f32 %v163
    %v180 = vcvt.s32.f32 %v164
    %v181 = vadd.f32 %v34, %v165
    %v182 = vadd.f32 %v35, %v166
    %v183 = vadd.f32 %v36, %v167
    %v184 = vadd.f32 %v37, %v168
    %v185 = vadd.f32 %v38, %v169
    %v186 = vadd.f32 %v39, %v170
    %v187 = vadd.f32 %v40, %v171
    %v188 = vadd.f32 %v41, %v172
    %v189 = vadd.f32 %v42, %v173
    %v190 = vadd.f32 %v43, %v174
    %v191 = vadd.f32 %v44, %v175
    %v192 = vadd.f32 %v45, %v176
    %v193 = vadd.f32 %v46, %v177
    %v194 = vadd.f32 %v47, %v178
    %v195 = vadd.f32 %v48, %v179
    %v196 = vadd.f32 %v49, %v180
    %v197 = vmul.f32 %v181, %v98
    %v198 = vmul.f32 %v182, %v99
    %v199 = vmul.f32 %v183, %v100
    %v200 = vmul.f32 %v184, %v101
    %v201 = vmul.f32 %v185, %v102
    %v202 = vmul.f32 %v186, %v103
    %v203 = vmul.f32 %v187, %v104
    %v204 = vmul.f32 %v188, %v105
    %v205 = vmul.f32 %v189, %v106
    %v206 = vmul.f32 %v190, %v107
    %v207 = vmul.f32 %v191, %v108
    %v208 = vmul.f32 %v192, %v109
    %v209 = vmul.f32 %v193, %v110
    %v210 = vmul.f32 %v194, %v111
    %v211 = vmul.f32 %v195, %v112
    %v212 = vmul.f32 %v196, %v113
    %v213 = vpack.c.bf16 %v198, %v197
    %v214 = vpack.c.bf16 %v200, %v199
    %v215 = vpack.c.bf16 %v202, %v201
    %v216 = vpack.c.bf16 %v204, %v203
    %v217 = vpack.c.bf16 %v206, %v205
    %v218 = vpack.c.bf16 %v208, %v207
    %v219 = vpack.c.bf16 %v210, %v209
    %v220 = vpack.c.bf16 %v212, %v211
    %v221 = vld [vmem:[%s1] sm:$0xf]
    %v222 = vld [vmem:[%s1 + $0x4] sm:$0xf]
    %v223 = vld [vmem:[%s1 + $0x8] sm:$0xf]
    %v224 = vld [vmem:[%s1 + $0xc] sm:$0xf]
    %v225 = vld [vmem:[%s1 + $0x10] sm:$0xf]
    %v226 = vld [vmem:[%s1 + $0x14] sm:$0xf]
    %v227 = vld [vmem:[%s1 + $0x18] sm:$0xf]
    %v228 = vld [vmem:[%s1 + $0x1c] sm:$0xf]
    %v229 = vld [vmem:[%s1 + $0x20] sm:$0xf]
    %v230 = vld [vmem:[%s1 + $0x24] sm:$0xf]
    %v231 = vld [vmem:[%s1 + $0x28] sm:$0xf]
    %v232 = vld [vmem:[%s1 + $0x2c] sm:$0xf]
    %v233 = vld [vmem:[%s1 + $0x30] sm:$0xf]
    %v234 = vld [vmem:[%s1 + $0x34] sm:$0xf]
    %v235 = vld [vmem:[%s1 + $0x38] sm:$0xf]
    %v236 = vld [vmem:[%s1 + $0x3c] sm:$0xf]
    %v253 = vunpack.c.l.b16 %v221
    %v254 = vunpack.c.l.b16 %v222
    %v255 = vunpack.c.l.b16 %v223
    %v256 = vunpack.c.l.b16 %v224
    %v257 = vunpack.c.l.b16 %v225
    %v258 = vunpack.c.l.b16 %v226
    %v259 = vunpack.c.l.b16 %v227
    %v260 = vunpack.c.l.b16 %v228
    %v261 = vunpack.c.l.b16 %v229
    %v262 = vunpack.c.l.b16 %v230
    %v263 = vunpack.c.l.b16 %v231
    %v264 = vunpack.c.l.b16 %v232
    %v265 = vunpack.c.l.b16 %v233
    %v266 = vunpack.c.l.b16 %v234
    %v267 = vunpack.c.l.b16 %v235
    %v268 = vunpack.c.l.b16 %v236
    %v269 = vpack.c.b16 %v254, %v253
    %v270 = vpack.c.b16 %v256, %v255
    %v271 = vpack.c.b16 %v258, %v257
    %v272 = vpack.c.b16 %v260, %v259
    %v273 = vpack.c.b16 %v262, %v261
    %v274 = vpack.c.b16 %v264, %v263
    %v275 = vpack.c.b16 %v266, %v265
    %v276 = vpack.c.b16 %v268, %v267
    %285 = vmatprep.subr.bf16.mxu0 0
    %286 = vmatpush1.bf16.msra.mxu0 %v269
    %287 = vmatprep.subr.bf16.mxu0 0
    %288 = vmatpush1.bf16.msra.mxu0 %v270
    %289 = vmatprep.subr.bf16.mxu0 0
    %290 = vmatpush1.bf16.msra.mxu0 %v271
    %291 = vmatprep.subr.bf16.mxu0 0
    %292 = vmatpush1.bf16.msra.mxu0 %v272
    %293 = vmatprep.subr.bf16.mxu0 0
    %294 = vmatpush1.bf16.msra.mxu0 %v273
    %295 = vmatprep.subr.bf16.mxu0 0
    %296 = vmatpush1.bf16.msra.mxu0 %v274
    %297 = vmatprep.subr.bf16.mxu0 0
    %298 = vmatpush1.bf16.msra.mxu0 %v275
    %299 = vmatprep.subr.bf16.mxu0 0
    %300 = vmatpush1.bf16.msra.mxu0 %v276
    %301 = vmatprep.subr.bf16.mxu0 0
    %302 = vmatpush1.bf16.msra.mxu0 0
    %303 = vmatprep.subr.bf16.mxu0 0
    %304 = vmatpush1.bf16.msra.mxu0 0
    %305 = vmatprep.subr.bf16.mxu0 0
    %306 = vmatpush1.bf16.msra.mxu0 0
    %307 = vmatprep.subr.bf16.mxu0 0
    %308 = vmatpush1.bf16.msra.mxu0 0
    %309 = vmatprep.subr.bf16.mxu0 0
    %310 = vmatpush1.bf16.msra.mxu0 0
    %311 = vmatprep.subr.bf16.mxu0 0
    %312 = vmatpush1.bf16.msra.mxu0 0
    %313 = vmatprep.subr.bf16.mxu0 0
    %314 = vmatpush1.bf16.msra.mxu0 0
    %315 = vmatprep.subr.bf16.mxu0 0
    %316 = vmatpush1.bf16.msra.mxu0 0
    %317 = vmatprep.mubr.bf16.mxu0 0
    %318 = vmatmul.mubr.bf16.gmra.mrb[0].mxu0 %v213
    %v319 = vpop.f32.mrb[0].mxu0
    %v320 = vadd.f32 0.0, %v319
    %v321 = vpop.f32.mrb[0].mxu0
    %v322 = vpop.f32.mrb[0].mxu0
    %v323 = vadd.f32 0.0, %v322
    %v324 = vpop.f32.mrb[0].mxu0
    %325 = vmatprep.mubr.bf16.mxu0 0
    %326 = vmatmul.mubr.bf16.gmra.mrb[0].mxu0 %v214
    %v327 = vpop.f32.mrb[0].mxu0
    %v328 = vadd.f32 0.0, %v327
    %v329 = vpop.f32.mrb[0].mxu0
    %v330 = vpop.f32.mrb[0].mxu0
    %v331 = vadd.f32 0.0, %v330
    %v332 = vpop.f32.mrb[0].mxu0
    %333 = vmatprep.mubr.bf16.mxu0 0
    %334 = vmatmul.mubr.bf16.gmra.mrb[0].mxu0 %v215
    %v335 = vpop.f32.mrb[0].mxu0
    %v336 = vadd.f32 0.0, %v335
    %v337 = vpop.f32.mrb[0].mxu0
    %v338 = vpop.f32.mrb[0].mxu0
    %v339 = vadd.f32 0.0, %v338
    %v340 = vpop.f32.mrb[0].mxu0
    %341 = vmatprep.mubr.bf16.mxu0 0
    %342 = vmatmul.mubr.bf16.gmra.mrb[0].mxu0 %v216
    %v343 = vpop.f32.mrb[0].mxu0
    %v344 = vadd.f32 0.0, %v343
    %v345 = vpop.f32.mrb[0].mxu0
    %v346 = vpop.f32.mrb[0].mxu0
    %v347 = vadd.f32 0.0, %v346
    %v348 = vpop.f32.mrb[0].mxu0
    %349 = vmatprep.mubr.bf16.mxu0 0
    %350 = vmatmul.mubr.bf16.gmra.mrb[0].mxu0 %v217
    %v351 = vpop.f32.mrb[0].mxu0
    %v352 = vadd.f32 0.0, %v351
    %v353 = vpop.f32.mrb[0].mxu0
    %v354 = vpop.f32.mrb[0].mxu0
    %v355 = vadd.f32 0.0, %v354
    %v356 = vpop.f32.mrb[0].mxu0
    %357 = vmatprep.mubr.bf16.mxu0 0
    %358 = vmatmul.mubr.bf16.gmra.mrb[0].mxu0 %v218
    %v359 = vpop.f32.mrb[0].mxu0
    %v360 = vadd.f32 0.0, %v359
    %v361 = vpop.f32.mrb[0].mxu0
    %v362 = vpop.f32.mrb[0].mxu0
    %v363 = vadd.f32 0.0, %v362
    %v364 = vpop.f32.mrb[0].mxu0
    %365 = vmatprep.mubr.bf16.mxu0 0
    %366 = vmatmul.mubr.bf16.gmra.mrb[0].mxu0 %v219
    %v367 = vpop.f32.mrb[0].mxu0
    %v368 = vadd.f32 0.0, %v367
    %v369 = vpop.f32.mrb[0].mxu0
    %v370 = vpop.f32.mrb[0].mxu0
    %v371 = vadd.f32 0.0, %v370
    %v372 = vpop.f32.mrb[0].mxu0
    %373 = vmatprep.mubr.bf16.mxu0 0
    %374 = vmatmul.mubr.bf16.gmra.mrb[0].mxu0 %v220
    %v375 = vpop.f32.mrb[0].mxu0
    %v376 = vadd.f32 0.0, %v375
    %v377 = vpop.f32.mrb[0].mxu0
    %v378 = vpop.f32.mrb[0].mxu0
    %v379 = vadd.f32 0.0, %v378
    %v380 = vpop.f32.mrb[0].mxu0
    %381 = vdwg.mxu0
    %v382 = vpack.c.bf16 %v323, %v320
    %v383 = vpack.c.bf16 %v331, %v328
    %v384 = vpack.c.bf16 %v339, %v336
    %v385 = vpack.c.bf16 %v347, %v344
    %v386 = vpack.c.bf16 %v355, %v352
    %v387 = vpack.c.bf16 %v363, %v360
    %v388 = vpack.c.bf16 %v371, %v368
    %v389 = vpack.c.bf16 %v379, %v376
    %v390 = vld [vmem:[%s3] sm:$0xf]
    %v391 = vld [vmem:[%s4] sm:$0x1]
    %v393 = vlaneseq
    %v394 = vshrl.u32 %v393, 7
    %v395 = vsub.s32 0, %v394
    %v396 = vrot.slane %v391, %v395
    %vm398 = vcmask 64512
    %v400 = vsel %vm398, %v382, 0
    %v403 = vsel %vm398, %v383, 0
    %v406 = vsel %vm398, %v384, 0
    %v409 = vsel %vm398, %v385, 0
    %v412 = vsel %vm398, %v386, 0
    %v415 = vsel %vm398, %v387, 0
    %v418 = vsel %vm398, %v388, 0
    %v421 = vsel %vm398, %v389, 0
    %vm423 = vcmask 1043456
    %v425 = vsel %vm423, %v390, 0
    %427 = vmatprep.subr.bf16.mxu0 0
    %428 = vmatpush1.bf16.msra.mxu0 %v425
    %429 = vmatprep.subr.bf16.mxu0 0
    %430 = vmatpush1.bf16.msra.mxu0 0
    %431 = vmatprep.subr.bf16.mxu0 0
    %432 = vmatpush1.bf16.msra.mxu0 0
    %433 = vmatprep.subr.bf16.mxu0 0
    %434 = vmatpush1.bf16.msra.mxu0 0
    %435 = vmatprep.subr.bf16.mxu0 0
    %436 = vmatpush1.bf16.msra.mxu0 0
    %437 = vmatprep.subr.bf16.mxu0 0
    %438 = vmatpush1.bf16.msra.mxu0 0
    %439 = vmatprep.subr.bf16.mxu0 0
    %440 = vmatpush1.bf16.msra.mxu0 0
    %441 = vmatprep.subr.bf16.mxu0 0
    %442 = vmatpush1.bf16.msra.mxu0 0
    %443 = vmatprep.subr.bf16.mxu0 0
    %444 = vmatpush1.bf16.msra.mxu0 0
    %445 = vmatprep.subr.bf16.mxu0 0
    %446 = vmatpush1.bf16.msra.mxu0 0
    %447 = vmatprep.subr.bf16.mxu0 0
    %448 = vmatpush1.bf16.msra.mxu0 0
    %449 = vmatprep.subr.bf16.mxu0 0
    %450 = vmatpush1.bf16.msra.mxu0 0
    %451 = vmatprep.subr.bf16.mxu0 0
    %452 = vmatpush1.bf16.msra.mxu0 0
    %453 = vmatprep.subr.bf16.mxu0 0
    %454 = vmatpush1.bf16.msra.mxu0 0
    %455 = vmatprep.subr.bf16.mxu0 0
    %456 = vmatpush1.bf16.msra.mxu0 0
    %457 = vmatprep.subr.bf16.mxu0 0
    %458 = vmatpush1.bf16.msra.mxu0 0
    %459 = vmatprep.mubr.bf16.mxu0 0
    %460 = vmatmul.mubr.bf16.gmra.mrb[0].mxu0 %v400
    %v461 = vpop.f32.mrb[0].mxu0
    %v462 = vadd.f32 %v396, %v461
    %v463 = vpop.f32.mrb[0].mxu0
    %v464 = vpop.f32.mrb[0].mxu0
    %v465 = vadd.f32 %v396, %v464
    %v466 = vpop.f32.mrb[0].mxu0
    %467 = vmatprep.mubr.bf16.mxu0 0
    %468 = vmatmul.mubr.bf16.gmra.mrb[0].mxu0 %v403
    %v469 = vpop.f32.mrb[0].mxu0
    %v470 = vadd.f32 %v396, %v469
    %v471 = vpop.f32.mrb[0].mxu0
    %v472 = vpop.f32.mrb[0].mxu0
    %v473 = vadd.f32 %v396, %v472
    %v474 = vpop.f32.mrb[0].mxu0
    %475 = vmatprep.mubr.bf16.mxu0 0
    %476 = vmatmul.mubr.bf16.gmra.mrb[0].mxu0 %v406
    %v477 = vpop.f32.mrb[0].mxu0
    %v478 = vadd.f32 %v396, %v477
    %v479 = vpop.f32.mrb[0].mxu0
    %v480 = vpop.f32.mrb[0].mxu0
    %v481 = vadd.f32 %v396, %v480
    %v482 = vpop.f32.mrb[0].mxu0
    %483 = vmatprep.mubr.bf16.mxu0 0
    %484 = vmatmul.mubr.bf16.gmra.mrb[0].mxu0 %v409
    %v485 = vpop.f32.mrb[0].mxu0
    %v486 = vadd.f32 %v396, %v485
    %v487 = vpop.f32.mrb[0].mxu0
    %v488 = vpop.f32.mrb[0].mxu0
    %v489 = vadd.f32 %v396, %v488
    %v490 = vpop.f32.mrb[0].mxu0
    %491 = vmatprep.mubr.bf16.mxu0 0
    %492 = vmatmul.mubr.bf16.gmra.mrb[0].mxu0 %v412
    %v493 = vpop.f32.mrb[0].mxu0
    %v494 = vadd.f32 %v396, %v493
    %v495 = vpop.f32.mrb[0].mxu0
    %v496 = vpop.f32.mrb[0].mxu0
    %v497 = vadd.f32 %v396, %v496
    %v498 = vpop.f32.mrb[0].mxu0
    %499 = vmatprep.mubr.bf16.mxu0 0
    %500 = vmatmul.mubr.bf16.gmra.mrb[0].mxu0 %v415
    %v501 = vpop.f32.mrb[0].mxu0
    %v502 = vadd.f32 %v396, %v501
    %v503 = vpop.f32.mrb[0].mxu0
    %v504 = vpop.f32.mrb[0].mxu0
    %v505 = vadd.f32 %v396, %v504
    %v506 = vpop.f32.mrb[0].mxu0
    %507 = vmatprep.mubr.bf16.mxu0 0
    %508 = vmatmul.mubr.bf16.gmra.mrb[0].mxu0 %v418
    %v509 = vpop.f32.mrb[0].mxu0
    %v510 = vadd.f32 %v396, %v509
    %v511 = vpop.f32.mrb[0].mxu0
    %v512 = vpop.f32.mrb[0].mxu0
    %v513 = vadd.f32 %v396, %v512
    %v514 = vpop.f32.mrb[0].mxu0
    %515 = vmatprep.mubr.bf16.mxu0 0
    %516 = vmatmul.mubr.bf16.gmra.mrb[0].mxu0 %v421
    %v517 = vpop.f32.mrb[0].mxu0
    %v518 = vadd.f32 %v396, %v517
    %v519 = vpop.f32.mrb[0].mxu0
    %v520 = vpop.f32.mrb[0].mxu0
    %v521 = vadd.f32 %v396, %v520
    %v522 = vpop.f32.mrb[0].mxu0
    %523 = vdwg.mxu0
    %v524 = vmax.f32 %v462, 0.0
    %v525 = vmax.f32 %v465, 0.0
    %v526 = vmax.f32 %v470, 0.0
    %v527 = vmax.f32 %v473, 0.0
    %v528 = vmax.f32 %v478, 0.0
    %v529 = vmax.f32 %v481, 0.0
    %v530 = vmax.f32 %v486, 0.0
    %v531 = vmax.f32 %v489, 0.0
    %v532 = vmax.f32 %v494, 0.0
    %v533 = vmax.f32 %v497, 0.0
    %v534 = vmax.f32 %v502, 0.0
    %v535 = vmax.f32 %v505, 0.0
    %v536 = vmax.f32 %v510, 0.0
    %v537 = vmax.f32 %v513, 0.0
    %v538 = vmax.f32 %v518, 0.0
    %v539 = vmax.f32 %v521, 0.0
    %v540 = vpack.c.bf16 %v525, %v524
    %v541 = vpack.c.bf16 %v527, %v526
    %v542 = vpack.c.bf16 %v529, %v528
    %v543 = vpack.c.bf16 %v531, %v530
    %v544 = vpack.c.bf16 %v533, %v532
    %v545 = vpack.c.bf16 %v535, %v534
    %v546 = vpack.c.bf16 %v537, %v536
    %v547 = vpack.c.bf16 %v539, %v538
    %548 = vmatprep.subr.bf16.mxu0 0
    %549 = vmatpush1.bf16.msra.mxu0 %v540
    %550 = vmatprep.subr.bf16.mxu0 0
    %551 = vmatpush1.bf16.msra.mxu0 %v541
    %552 = vmatprep.subr.bf16.mxu0 0
    %553 = vmatpush1.bf16.msra.mxu0 %v542
    %554 = vmatprep.subr.bf16.mxu0 0
    %555 = vmatpush1.bf16.msra.mxu0 %v543
    %556 = vmatprep.subr.bf16.mxu0 0
    %557 = vmatpush1.bf16.msra.mxu0 %v544
    %558 = vmatprep.subr.bf16.mxu0 0
    %559 = vmatpush1.bf16.msra.mxu0 %v545
    %560 = vmatprep.subr.bf16.mxu0 0
    %561 = vmatpush1.bf16.msra.mxu0 %v546
    %562 = vmatprep.subr.bf16.mxu0 0
    %563 = vmatpush1.bf16.msra.mxu0 %v547
    %564 = vmatprep.subr.bf16.mxu0 0
    %565 = vmatpush1.bf16.msra.mxu0 0
    %566 = vmatprep.subr.bf16.mxu0 0
    %567 = vmatpush1.bf16.msra.mxu0 0
    %568 = vmatprep.subr.bf16.mxu0 0
    %569 = vmatpush1.bf16.msra.mxu0 0
    %570 = vmatprep.subr.bf16.mxu0 0
    %571 = vmatpush1.bf16.msra.mxu0 0
    %572 = vmatprep.subr.bf16.mxu0 0
    %573 = vmatpush1.bf16.msra.mxu0 0
    %574 = vmatprep.subr.bf16.mxu0 0
    %575 = vmatpush1.bf16.msra.mxu0 0
    %576 = vmatprep.subr.bf16.mxu0 0
    %577 = vmatpush1.bf16.msra.mxu0 0
    %578 = vmatprep.subr.bf16.mxu0 0
    %579 = vmatpush1.bf16.msra.mxu0 0
    %580 = vmatprep.mubr.bf16.mxu0 0
    %581 = vmatmul.mubr.bf16.gmra.mrb[0].mxu0 %v213
    %v582 = vpop.f32.mrb[0].mxu0
    %v583 = vadd.f32 0.0, %v582
    %v584 = vpop.f32.mrb[0].mxu0
    %v585 = vpop.f32.mrb[0].mxu0
    %v586 = vadd.f32 0.0, %v585
    %v587 = vpop.f32.mrb[0].mxu0
    %588 = vmatprep.mubr.bf16.mxu0 0
    %589 = vmatmul.mubr.bf16.gmra.mrb[0].mxu0 %v214
    %v590 = vpop.f32.mrb[0].mxu0
    %v591 = vadd.f32 0.0, %v590
    %v592 = vpop.f32.mrb[0].mxu0
    %v593 = vpop.f32.mrb[0].mxu0
    %v594 = vadd.f32 0.0, %v593
    %v595 = vpop.f32.mrb[0].mxu0
    %596 = vmatprep.mubr.bf16.mxu0 0
    %597 = vmatmul.mubr.bf16.gmra.mrb[0].mxu0 %v215
    %v598 = vpop.f32.mrb[0].mxu0
    %v599 = vadd.f32 0.0, %v598
    %v600 = vpop.f32.mrb[0].mxu0
    %v601 = vpop.f32.mrb[0].mxu0
    %v602 = vadd.f32 0.0, %v601
    %v603 = vpop.f32.mrb[0].mxu0
    %604 = vmatprep.mubr.bf16.mxu0 0
    %605 = vmatmul.mubr.bf16.gmra.mrb[0].mxu0 %v216
    %v606 = vpop.f32.mrb[0].mxu0
    %v607 = vadd.f32 0.0, %v606
    %v608 = vpop.f32.mrb[0].mxu0
    %v609 = vpop.f32.mrb[0].mxu0
    %v610 = vadd.f32 0.0, %v609
    %v611 = vpop.f32.mrb[0].mxu0
    %612 = vmatprep.mubr.bf16.mxu0 0
    %613 = vmatmul.mubr.bf16.gmra.mrb[0].mxu0 %v217
    %v614 = vpop.f32.mrb[0].mxu0
    %v615 = vadd.f32 0.0, %v614
    %v616 = vpop.f32.mrb[0].mxu0
    %v617 = vpop.f32.mrb[0].mxu0
    %v618 = vadd.f32 0.0, %v617
    %v619 = vpop.f32.mrb[0].mxu0
    %620 = vmatprep.mubr.bf16.mxu0 0
    %621 = vmatmul.mubr.bf16.gmra.mrb[0].mxu0 %v218
    %v622 = vpop.f32.mrb[0].mxu0
    %v623 = vadd.f32 0.0, %v622
    %v624 = vpop.f32.mrb[0].mxu0
    %v625 = vpop.f32.mrb[0].mxu0
    %v626 = vadd.f32 0.0, %v625
    %v627 = vpop.f32.mrb[0].mxu0
    %628 = vmatprep.mubr.bf16.mxu0 0
    %629 = vmatmul.mubr.bf16.gmra.mrb[0].mxu0 %v219
    %v630 = vpop.f32.mrb[0].mxu0
    %v631 = vadd.f32 0.0, %v630
    %v632 = vpop.f32.mrb[0].mxu0
    %v633 = vpop.f32.mrb[0].mxu0
    %v634 = vadd.f32 0.0, %v633
    %v635 = vpop.f32.mrb[0].mxu0
    %636 = vmatprep.mubr.bf16.mxu0 0
    %637 = vmatmul.mubr.bf16.gmra.mrb[0].mxu0 %v220
    %v638 = vpop.f32.mrb[0].mxu0
    %v639 = vadd.f32 0.0, %v638
    %v640 = vpop.f32.mrb[0].mxu0
    %v641 = vpop.f32.mrb[0].mxu0
    %v642 = vadd.f32 0.0, %v641
    %v643 = vpop.f32.mrb[0].mxu0
    %644 = vdwg.mxu0
    %v645 = vpack.c.bf16 %v586, %v583
    %v646 = vpack.c.bf16 %v594, %v591
    %v647 = vpack.c.bf16 %v602, %v599
    %v648 = vpack.c.bf16 %v610, %v607
    %v649 = vpack.c.bf16 %v618, %v615
    %v650 = vpack.c.bf16 %v626, %v623
    %v651 = vpack.c.bf16 %v634, %v631
    %v652 = vpack.c.bf16 %v642, %v639
    %v653 = vld [vmem:[%s5] sm:$0xf]
    %v654 = vld [vmem:[%s5 + $0x4] sm:$0xf]
    %v655 = vld [vmem:[%s5 + $0x8] sm:$0xf]
    %v656 = vld [vmem:[%s5 + $0xc] sm:$0xf]
    %v657 = vld [vmem:[%s6] sm:$0x1]
    %v659 = vlaneseq
    %v660 = vshrl.u32 %v659, 7
    %v661 = vsub.s32 0, %v660
    %v662 = vrot.slane %v657, %v661
    %v668 = vunpack.c.l.b16 %v653
    %v669 = vunpack.c.l.b16 %v654
    %v670 = vunpack.c.l.b16 %v655
    %v671 = vunpack.c.l.b16 %v656
    %v672 = vpack.c.b16 %v669, %v668
    %v673 = vpack.c.b16 %v671, %v670
    %vm676 = vcmask 261120
    %v678 = vsel %vm676, %v645, 0
    %v681 = vsel %vm676, %v646, 0
    %v684 = vsel %vm676, %v647, 0
    %v687 = vsel %vm676, %v648, 0
    %v690 = vsel %vm676, %v649, 0
    %v693 = vsel %vm676, %v650, 0
    %v696 = vsel %vm676, %v651, 0
    %v699 = vsel %vm676, %v652, 0
    %701 = vmatprep.subr.bf16.mxu0 0
    %702 = vmatpush1.bf16.msra.mxu0 %v672
    %703 = vmatprep.subr.bf16.mxu0 0
    %704 = vmatpush1.bf16.msra.mxu0 %v673
    %705 = vmatprep.subr.bf16.mxu0 0
    %706 = vmatpush1.bf16.msra.mxu0 0
    %707 = vmatprep.subr.bf16.mxu0 0
    %708 = vmatpush1.bf16.msra.mxu0 0
    %709 = vmatprep.subr.bf16.mxu0 0
    %710 = vmatpush1.bf16.msra.mxu0 0
    %711 = vmatprep.subr.bf16.mxu0 0
    %712 = vmatpush1.bf16.msra.mxu0 0
    %713 = vmatprep.subr.bf16.mxu0 0
    %714 = vmatpush1.bf16.msra.mxu0 0
    %715 = vmatprep.subr.bf16.mxu0 0
    %716 = vmatpush1.bf16.msra.mxu0 0
    %717 = vmatprep.subr.bf16.mxu0 0
    %718 = vmatpush1.bf16.msra.mxu0 0
    %719 = vmatprep.subr.bf16.mxu0 0
    %720 = vmatpush1.bf16.msra.mxu0 0
    %721 = vmatprep.subr.bf16.mxu0 0
    %722 = vmatpush1.bf16.msra.mxu0 0
    %723 = vmatprep.subr.bf16.mxu0 0
    %724 = vmatpush1.bf16.msra.mxu0 0
    %725 = vmatprep.subr.bf16.mxu0 0
    %726 = vmatpush1.bf16.msra.mxu0 0
    %727 = vmatprep.subr.bf16.mxu0 0
    %728 = vmatpush1.bf16.msra.mxu0 0
    %729 = vmatprep.subr.bf16.mxu0 0
    %730 = vmatpush1.bf16.msra.mxu0 0
    %731 = vmatprep.subr.bf16.mxu0 0
    %732 = vmatpush1.bf16.msra.mxu0 0
    %733 = vmatprep.mubr.bf16.mxu0 0
    %734 = vmatmul.mubr.bf16.gmra.mrb[0].mxu0 %v678
    %v735 = vpop.f32.mrb[0].mxu0
    %v736 = vadd.f32 %v662, %v735
    %v737 = vpop.f32.mrb[0].mxu0
    %v738 = vpop.f32.mrb[0].mxu0
    %v739 = vadd.f32 %v662, %v738
    %v740 = vpop.f32.mrb[0].mxu0
    %741 = vmatprep.mubr.bf16.mxu0 0
    %742 = vmatmul.mubr.bf16.gmra.mrb[0].mxu0 %v681
    %v743 = vpop.f32.mrb[0].mxu0
    %v744 = vadd.f32 %v662, %v743
    %v745 = vpop.f32.mrb[0].mxu0
    %v746 = vpop.f32.mrb[0].mxu0
    %v747 = vadd.f32 %v662, %v746
    %v748 = vpop.f32.mrb[0].mxu0
    %749 = vmatprep.mubr.bf16.mxu0 0
    %750 = vmatmul.mubr.bf16.gmra.mrb[0].mxu0 %v684
    %v751 = vpop.f32.mrb[0].mxu0
    %v752 = vadd.f32 %v662, %v751
    %v753 = vpop.f32.mrb[0].mxu0
    %v754 = vpop.f32.mrb[0].mxu0
    %v755 = vadd.f32 %v662, %v754
    %v756 = vpop.f32.mrb[0].mxu0
    %757 = vmatprep.mubr.bf16.mxu0 0
    %758 = vmatmul.mubr.bf16.gmra.mrb[0].mxu0 %v687
    %v759 = vpop.f32.mrb[0].mxu0
    %v760 = vadd.f32 %v662, %v759
    %v761 = vpop.f32.mrb[0].mxu0
    %v762 = vpop.f32.mrb[0].mxu0
    %v763 = vadd.f32 %v662, %v762
    %v764 = vpop.f32.mrb[0].mxu0
    %765 = vmatprep.mubr.bf16.mxu0 0
    %766 = vmatmul.mubr.bf16.gmra.mrb[0].mxu0 %v690
    %v767 = vpop.f32.mrb[0].mxu0
    %v768 = vadd.f32 %v662, %v767
    %v769 = vpop.f32.mrb[0].mxu0
    %v770 = vpop.f32.mrb[0].mxu0
    %v771 = vadd.f32 %v662, %v770
    %v772 = vpop.f32.mrb[0].mxu0
    %773 = vmatprep.mubr.bf16.mxu0 0
    %774 = vmatmul.mubr.bf16.gmra.mrb[0].mxu0 %v693
    %v775 = vpop.f32.mrb[0].mxu0
    %v776 = vadd.f32 %v662, %v775
    %v777 = vpop.f32.mrb[0].mxu0
    %v778 = vpop.f32.mrb[0].mxu0
    %v779 = vadd.f32 %v662, %v778
    %v780 = vpop.f32.mrb[0].mxu0
    %781 = vmatprep.mubr.bf16.mxu0 0
    %782 = vmatmul.mubr.bf16.gmra.mrb[0].mxu0 %v696
    %v783 = vpop.f32.mrb[0].mxu0
    %v784 = vadd.f32 %v662, %v783
    %v785 = vpop.f32.mrb[0].mxu0
    %v786 = vpop.f32.mrb[0].mxu0
    %v787 = vadd.f32 %v662, %v786
    %v788 = vpop.f32.mrb[0].mxu0
    %789 = vmatprep.mubr.bf16.mxu0 0
    %790 = vmatmul.mubr.bf16.gmra.mrb[0].mxu0 %v699
    %v791 = vpop.f32.mrb[0].mxu0
    %v792 = vadd.f32 %v662, %v791
    %v793 = vpop.f32.mrb[0].mxu0
    %v794 = vpop.f32.mrb[0].mxu0
    %v795 = vadd.f32 %v662, %v794
    %v796 = vpop.f32.mrb[0].mxu0
    %797 = vdwg.mxu0
    %v798 = vld [vmem:[%s7] sm:$0xf]
    %v799 = vld [vmem:[%s7 + $0x4] sm:$0xf]
    %v800 = vld [vmem:[%s7 + $0x8] sm:$0xf]
    %v801 = vld [vmem:[%s7 + $0xc] sm:$0xf]
    %v802 = vld [vmem:[%s8] sm:$0x1]
    %v804 = vlaneseq
    %v805 = vshrl.u32 %v804, 7
    %v806 = vsub.s32 0, %v805
    %v807 = vrot.slane %v802, %v806
    %v813 = vunpack.c.l.b16 %v798
    %v814 = vunpack.c.l.b16 %v799
    %v815 = vunpack.c.l.b16 %v800
    %v816 = vunpack.c.l.b16 %v801
    %v817 = vpack.c.b16 %v814, %v813
    %v818 = vpack.c.b16 %v816, %v815
    %821 = vmatprep.subr.bf16.mxu0 0
    %822 = vmatpush1.bf16.msra.mxu0 %v817
    %823 = vmatprep.subr.bf16.mxu0 0
    %824 = vmatpush1.bf16.msra.mxu0 %v818
    %825 = vmatprep.subr.bf16.mxu0 0
    %826 = vmatpush1.bf16.msra.mxu0 0
    %827 = vmatprep.subr.bf16.mxu0 0
    %828 = vmatpush1.bf16.msra.mxu0 0
    %829 = vmatprep.subr.bf16.mxu0 0
    %830 = vmatpush1.bf16.msra.mxu0 0
    %831 = vmatprep.subr.bf16.mxu0 0
    %832 = vmatpush1.bf16.msra.mxu0 0
    %833 = vmatprep.subr.bf16.mxu0 0
    %834 = vmatpush1.bf16.msra.mxu0 0
    %835 = vmatprep.subr.bf16.mxu0 0
    %836 = vmatpush1.bf16.msra.mxu0 0
    %837 = vmatprep.subr.bf16.mxu0 0
    %838 = vmatpush1.bf16.msra.mxu0 0
    %839 = vmatprep.subr.bf16.mxu0 0
    %840 = vmatpush1.bf16.msra.mxu0 0
    %841 = vmatprep.subr.bf16.mxu0 0
    %842 = vmatpush1.bf16.msra.mxu0 0
    %843 = vmatprep.subr.bf16.mxu0 0
    %844 = vmatpush1.bf16.msra.mxu0 0
    %845 = vmatprep.subr.bf16.mxu0 0
    %846 = vmatpush1.bf16.msra.mxu0 0
    %847 = vmatprep.subr.bf16.mxu0 0
    %848 = vmatpush1.bf16.msra.mxu0 0
    %849 = vmatprep.subr.bf16.mxu0 0
    %850 = vmatpush1.bf16.msra.mxu0 0
    %851 = vmatprep.subr.bf16.mxu0 0
    %852 = vmatpush1.bf16.msra.mxu0 0
    %853 = vmatprep.mubr.bf16.mxu0 0
    %854 = vmatmul.mubr.bf16.gmra.mrb[0].mxu0 %v678
    %v855 = vpop.f32.mrb[0].mxu0
    %v856 = vadd.f32 %v807, %v855
    %v857 = vpop.f32.mrb[0].mxu0
    %v858 = vpop.f32.mrb[0].mxu0
    %v859 = vadd.f32 %v807, %v858
    %v860 = vpop.f32.mrb[0].mxu0
    %861 = vmatprep.mubr.bf16.mxu0 0
    %862 = vmatmul.mubr.bf16.gmra.mrb[0].mxu0 %v681
    %v863 = vpop.f32.mrb[0].mxu0
    %v864 = vadd.f32 %v807, %v863
    %v865 = vpop.f32.mrb[0].mxu0
    %v866 = vpop.f32.mrb[0].mxu0
    %v867 = vadd.f32 %v807, %v866
    %v868 = vpop.f32.mrb[0].mxu0
    %869 = vmatprep.mubr.bf16.mxu0 0
    %870 = vmatmul.mubr.bf16.gmra.mrb[0].mxu0 %v684
    %v871 = vpop.f32.mrb[0].mxu0
    %v872 = vadd.f32 %v807, %v871
    %v873 = vpop.f32.mrb[0].mxu0
    %v874 = vpop.f32.mrb[0].mxu0
    %v875 = vadd.f32 %v807, %v874
    %v876 = vpop.f32.mrb[0].mxu0
    %877 = vmatprep.mubr.bf16.mxu0 0
    %878 = vmatmul.mubr.bf16.gmra.mrb[0].mxu0 %v687
    %v879 = vpop.f32.mrb[0].mxu0
    %v880 = vadd.f32 %v807, %v879
    %v881 = vpop.f32.mrb[0].mxu0
    %v882 = vpop.f32.mrb[0].mxu0
    %v883 = vadd.f32 %v807, %v882
    %v884 = vpop.f32.mrb[0].mxu0
    %885 = vmatprep.mubr.bf16.mxu0 0
    %886 = vmatmul.mubr.bf16.gmra.mrb[0].mxu0 %v690
    %v887 = vpop.f32.mrb[0].mxu0
    %v888 = vadd.f32 %v807, %v887
    %v889 = vpop.f32.mrb[0].mxu0
    %v890 = vpop.f32.mrb[0].mxu0
    %v891 = vadd.f32 %v807, %v890
    %v892 = vpop.f32.mrb[0].mxu0
    %893 = vmatprep.mubr.bf16.mxu0 0
    %894 = vmatmul.mubr.bf16.gmra.mrb[0].mxu0 %v693
    %v895 = vpop.f32.mrb[0].mxu0
    %v896 = vadd.f32 %v807, %v895
    %v897 = vpop.f32.mrb[0].mxu0
    %v898 = vpop.f32.mrb[0].mxu0
    %v899 = vadd.f32 %v807, %v898
    %v900 = vpop.f32.mrb[0].mxu0
    %901 = vmatprep.mubr.bf16.mxu0 0
    %902 = vmatmul.mubr.bf16.gmra.mrb[0].mxu0 %v696
    %v903 = vpop.f32.mrb[0].mxu0
    %v904 = vadd.f32 %v807, %v903
    %v905 = vpop.f32.mrb[0].mxu0
    %v906 = vpop.f32.mrb[0].mxu0
    %v907 = vadd.f32 %v807, %v906
    %v908 = vpop.f32.mrb[0].mxu0
    %909 = vmatprep.mubr.bf16.mxu0 0
    %910 = vmatmul.mubr.bf16.gmra.mrb[0].mxu0 %v699
    %v911 = vpop.f32.mrb[0].mxu0
    %v912 = vadd.f32 %v807, %v911
    %v913 = vpop.f32.mrb[0].mxu0
    %v914 = vpop.f32.mrb[0].mxu0
    %v915 = vadd.f32 %v807, %v914
    %v916 = vpop.f32.mrb[0].mxu0
    %917 = vdwg.mxu0
    %v918 = vld [vmem:[%s2] sm:$0xff]
    %v919 = vld [vmem:[%s2 + $0x8] sm:$0xff]
    %v920 = vld [vmem:[%s2 + $0x10] sm:$0xff]
    %v921 = vld [vmem:[%s2 + $0x18] sm:$0xff]
    %v922 = vld [vmem:[%s2 + $0x20] sm:$0xff]
    %v923 = vld [vmem:[%s2 + $0x28] sm:$0xff]
    %v924 = vld [vmem:[%s2 + $0x30] sm:$0xff]
    %v925 = vld [vmem:[%s2 + $0x38] sm:$0xff]
    %v926 = vld [vmem:[%s2 + $0x40] sm:$0xff]
    %v927 = vld [vmem:[%s2 + $0x48] sm:$0xff]
    %v928 = vld [vmem:[%s2 + $0x50] sm:$0xff]
    %v929 = vld [vmem:[%s2 + $0x58] sm:$0xff]
    %v930 = vld [vmem:[%s2 + $0x60] sm:$0xff]
    %v931 = vld [vmem:[%s2 + $0x68] sm:$0xff]
    %v932 = vld [vmem:[%s2 + $0x70] sm:$0xff]
    %v933 = vld [vmem:[%s2 + $0x78] sm:$0xff]
    %v934 = vmul.f32 %v856, 1.442695
    %v935 = vpow.pop %v934
    %v936 = vmul.f32 %v859, 1.442695
    %v937 = vpow.pop %v936
    %v938 = vmul.f32 %v864, 1.442695
    %v939 = vpow.pop %v938
    %v940 = vmul.f32 %v867, 1.442695
    %v941 = vpow.pop %v940
    %v942 = vmul.f32 %v872, 1.442695
    %v943 = vpow.pop %v942
    %v944 = vmul.f32 %v875, 1.442695
    %v945 = vpow.pop %v944
    %v946 = vmul.f32 %v880, 1.442695
    %v947 = vpow.pop %v946
    %v948 = vmul.f32 %v883, 1.442695
    %v949 = vpow.pop %v948
    %v950 = vmul.f32 %v888, 1.442695
    %v951 = vpow.pop %v950
    %v952 = vmul.f32 %v891, 1.442695
    %v953 = vpow.pop %v952
    %v954 = vmul.f32 %v896, 1.442695
    %v955 = vpow.pop %v954
    %v956 = vmul.f32 %v899, 1.442695
    %v957 = vpow.pop %v956
    %v958 = vmul.f32 %v904, 1.442695
    %v959 = vpow.pop %v958
    %v960 = vmul.f32 %v907, 1.442695
    %v961 = vpow.pop %v960
    %v962 = vmul.f32 %v912, 1.442695
    %v963 = vpow.pop %v962
    %v964 = vmul.f32 %v915, 1.442695
    %v965 = vpow.pop %v964
    %v966 = vmul.f32 %v918, %v935
    %v967 = vmul.f32 %v919, %v937
    %v968 = vmul.f32 %v920, %v939
    %v969 = vmul.f32 %v921, %v941
    %v970 = vmul.f32 %v922, %v943
    %v971 = vmul.f32 %v923, %v945
    %v972 = vmul.f32 %v924, %v947
    %v973 = vmul.f32 %v925, %v949
    %v974 = vmul.f32 %v926, %v951
    %v975 = vmul.f32 %v927, %v953
    %v976 = vmul.f32 %v928, %v955
    %v977 = vmul.f32 %v929, %v957
    %v978 = vmul.f32 %v930, %v959
    %v979 = vmul.f32 %v931, %v961
    %v980 = vmul.f32 %v932, %v963
    %v981 = vmul.f32 %v933, %v965
    %v982 = vadd.f32 %v736, %v966
    %v983 = vadd.f32 %v739, %v967
    %v984 = vadd.f32 %v744, %v968
    %v985 = vadd.f32 %v747, %v969
    %v986 = vadd.f32 %v752, %v970
    %v987 = vadd.f32 %v755, %v971
    %v988 = vadd.f32 %v760, %v972
    %v989 = vadd.f32 %v763, %v973
    %v990 = vadd.f32 %v768, %v974
    %v991 = vadd.f32 %v771, %v975
    %v992 = vadd.f32 %v776, %v976
    %v993 = vadd.f32 %v779, %v977
    %v994 = vadd.f32 %v784, %v978
    %v995 = vadd.f32 %v787, %v979
    %v996 = vadd.f32 %v792, %v980
    %v997 = vadd.f32 %v795, %v981
    %v998 = vpack.c.bf16 %v983, %v982
    %v999 = vpack.c.bf16 %v985, %v984
    %v1000 = vpack.c.bf16 %v987, %v986
    %v1001 = vpack.c.bf16 %v989, %v988
    %v1002 = vpack.c.bf16 %v991, %v990
    %v1003 = vpack.c.bf16 %v993, %v992
    %v1004 = vpack.c.bf16 %v995, %v994
    %v1005 = vpack.c.bf16 %v997, %v996
    %v1007 = vsel %vm676, %v998, 0
    %v1010 = vsel %vm676, %v999, 0
    %v1013 = vsel %vm676, %v1000, 0
    %v1016 = vsel %vm676, %v1001, 0
    %v1019 = vsel %vm676, %v1002, 0
    %v1022 = vsel %vm676, %v1003, 0
    %v1025 = vsel %vm676, %v1004, 0
    %v1028 = vsel %vm676, %v1005, 0
    %1030 = vmatprep.subr.bf16.mxu0 0
    %1031 = vmatpush1.bf16.xpose.msra.mxu0 %v1007
    %1032 = vmatprep.subr.bf16.mxu0 0
    %1033 = vmatpush1.bf16.xpose.msra.mxu0 %v1010
    %1034 = vmatprep.subr.bf16.mxu0 0
    %1035 = vmatpush1.bf16.xpose.msra.mxu0 %v1013
    %1036 = vmatprep.subr.bf16.mxu0 0
    %1037 = vmatpush1.bf16.xpose.msra.mxu0 %v1016
    %1038 = vmatprep.subr.bf16.mxu0 0
    %1039 = vmatpush1.bf16.xpose.msra.mxu0 %v1019
    %1040 = vmatprep.subr.bf16.mxu0 0
    %1041 = vmatpush1.bf16.xpose.msra.mxu0 %v1022
    %1042 = vmatprep.subr.bf16.mxu0 0
    %1043 = vmatpush1.bf16.xpose.msra.mxu0 %v1025
    %1044 = vmatprep.subr.bf16.mxu0 0
    %1045 = vmatpush1.bf16.xpose.msra.mxu0 %v1028
    %1046 = vmatprep.subr.bf16.mxu0 0
    %1047 = vmatpush1.bf16.xpose.msra.mxu0 0
    %1048 = vmatprep.subr.bf16.mxu0 0
    %1049 = vmatpush1.bf16.xpose.msra.mxu0 0
    %1050 = vmatprep.subr.bf16.mxu0 0
    %1051 = vmatpush1.bf16.xpose.msra.mxu0 0
    %1052 = vmatprep.subr.bf16.mxu0 0
    %1053 = vmatpush1.bf16.xpose.msra.mxu0 0
    %1054 = vmatprep.subr.bf16.mxu0 0
    %1055 = vmatpush1.bf16.xpose.msra.mxu0 0
    %1056 = vmatprep.subr.bf16.mxu0 0
    %1057 = vmatpush1.bf16.xpose.msra.mxu0 0
    %1058 = vmatprep.subr.bf16.mxu0 0
    %1059 = vmatpush1.bf16.xpose.msra.mxu0 0
    %1060 = vmatprep.subr.bf16.mxu0 0
    %1061 = vmatpush1.bf16.xpose.msra.mxu0 0
    %1062 = vmatprep.mubr.bf16.mxu0 0
    %1063 = vmatmul.mubr.bf16.gmra.mrb[0].mxu0 %v1007
    %v1064 = vpop.f32.mrb[0].mxu0
    %v1065 = vadd.f32 0.0, %v1064
    %v1066 = vpop.f32.mrb[0].mxu0
    %v1067 = vpop.f32.mrb[0].mxu0
    %v1068 = vadd.f32 0.0, %v1067
    %v1069 = vpop.f32.mrb[0].mxu0
    %1070 = vmatprep.mubr.bf16.mxu0 0
    %1071 = vmatmul.mubr.bf16.gmra.mrb[0].mxu0 %v1010
    %v1072 = vpop.f32.mrb[0].mxu0
    %v1073 = vadd.f32 0.0, %v1072
    %v1074 = vpop.f32.mrb[0].mxu0
    %v1075 = vpop.f32.mrb[0].mxu0
    %v1076 = vadd.f32 0.0, %v1075
    %v1077 = vpop.f32.mrb[0].mxu0
    %1078 = vmatprep.mubr.bf16.mxu0 0
    %1079 = vmatmul.mubr.bf16.gmra.mrb[0].mxu0 %v1013
    %v1080 = vpop.f32.mrb[0].mxu0
    %v1081 = vadd.f32 0.0, %v1080
    %v1082 = vpop.f32.mrb[0].mxu0
    %v1083 = vpop.f32.mrb[0].mxu0
    %v1084 = vadd.f32 0.0, %v1083
    %v1085 = vpop.f32.mrb[0].mxu0
    %1086 = vmatprep.mubr.bf16.mxu0 0
    %1087 = vmatmul.mubr.bf16.gmra.mrb[0].mxu0 %v1016
    %v1088 = vpop.f32.mrb[0].mxu0
    %v1089 = vadd.f32 0.0, %v1088
    %v1090 = vpop.f32.mrb[0].mxu0
    %v1091 = vpop.f32.mrb[0].mxu0
    %v1092 = vadd.f32 0.0, %v1091
    %v1093 = vpop.f32.mrb[0].mxu0
    %1094 = vmatprep.mubr.bf16.mxu0 0
    %1095 = vmatmul.mubr.bf16.gmra.mrb[0].mxu0 %v1019
    %v1096 = vpop.f32.mrb[0].mxu0
    %v1097 = vadd.f32 0.0, %v1096
    %v1098 = vpop.f32.mrb[0].mxu0
    %v1099 = vpop.f32.mrb[0].mxu0
    %v1100 = vadd.f32 0.0, %v1099
    %v1101 = vpop.f32.mrb[0].mxu0
    %1102 = vmatprep.mubr.bf16.mxu0 0
    %1103 = vmatmul.mubr.bf16.gmra.mrb[0].mxu0 %v1022
    %v1104 = vpop.f32.mrb[0].mxu0
    %v1105 = vadd.f32 0.0, %v1104
    %v1106 = vpop.f32.mrb[0].mxu0
    %v1107 = vpop.f32.mrb[0].mxu0
    %v1108 = vadd.f32 0.0, %v1107
    %v1109 = vpop.f32.mrb[0].mxu0
    %1110 = vmatprep.mubr.bf16.mxu0 0
    %1111 = vmatmul.mubr.bf16.gmra.mrb[0].mxu0 %v1025
    %v1112 = vpop.f32.mrb[0].mxu0
    %v1113 = vadd.f32 0.0, %v1112
    %v1114 = vpop.f32.mrb[0].mxu0
    %v1115 = vpop.f32.mrb[0].mxu0
    %v1116 = vadd.f32 0.0, %v1115
    %v1117 = vpop.f32.mrb[0].mxu0
    %1118 = vmatprep.mubr.bf16.mxu0 0
    %1119 = vmatmul.mubr.bf16.gmra.mrb[0].mxu0 %v1028
    %v1120 = vpop.f32.mrb[0].mxu0
    %v1121 = vadd.f32 0.0, %v1120
    %v1122 = vpop.f32.mrb[0].mxu0
    %v1123 = vpop.f32.mrb[0].mxu0
    %v1124 = vadd.f32 0.0, %v1123
    %v1125 = vpop.f32.mrb[0].mxu0
    %1126 = vdwg.mxu0
    %v1127 = vsub.f32 0.0, %v1065
    %v1128 = vsub.f32 0.0, %v1068
    %v1129 = vsub.f32 0.0, %v1073
    %v1130 = vsub.f32 0.0, %v1076
    %v1131 = vsub.f32 0.0, %v1081
    %v1132 = vsub.f32 0.0, %v1084
    %v1133 = vsub.f32 0.0, %v1089
    %v1134 = vsub.f32 0.0, %v1092
    %v1135 = vsub.f32 0.0, %v1097
    %v1136 = vsub.f32 0.0, %v1100
    %v1137 = vsub.f32 0.0, %v1105
    %v1138 = vsub.f32 0.0, %v1108
    %v1139 = vsub.f32 0.0, %v1113
    %v1140 = vsub.f32 0.0, %v1116
    %v1141 = vsub.f32 0.0, %v1121
    %v1142 = vsub.f32 0.0, %v1124
    %v1143 = vmul.f32 %v1127, 1.442695
    %v1144 = vpow.pop %v1143
    %v1145 = vmul.f32 %v1128, 1.442695
    %v1146 = vpow.pop %v1145
    %v1147 = vmul.f32 %v1129, 1.442695
    %v1148 = vpow.pop %v1147
    %v1149 = vmul.f32 %v1130, 1.442695
    %v1150 = vpow.pop %v1149
    %v1151 = vmul.f32 %v1131, 1.442695
    %v1152 = vpow.pop %v1151
    %v1153 = vmul.f32 %v1132, 1.442695
    %v1154 = vpow.pop %v1153
    %v1155 = vmul.f32 %v1133, 1.442695
    %v1156 = vpow.pop %v1155
    %v1157 = vmul.f32 %v1134, 1.442695
    %v1158 = vpow.pop %v1157
    %v1159 = vmul.f32 %v1135, 1.442695
    %v1160 = vpow.pop %v1159
    %v1161 = vmul.f32 %v1136, 1.442695
    %v1162 = vpow.pop %v1161
    %v1163 = vmul.f32 %v1137, 1.442695
    %v1164 = vpow.pop %v1163
    %v1165 = vmul.f32 %v1138, 1.442695
    %v1166 = vpow.pop %v1165
    %v1167 = vmul.f32 %v1139, 1.442695
    %v1168 = vpow.pop %v1167
    %v1169 = vmul.f32 %v1140, 1.442695
    %v1170 = vpow.pop %v1169
    %v1171 = vmul.f32 %v1141, 1.442695
    %v1172 = vpow.pop %v1171
    %v1173 = vmul.f32 %v1142, 1.442695
    %v1174 = vpow.pop %v1173
    %v1175 = vadd.f32 %v1144, 1.0
    %v1176 = vadd.f32 %v1146, 1.0
    %v1177 = vadd.f32 %v1148, 1.0
    %v1178 = vadd.f32 %v1150, 1.0
    %v1179 = vadd.f32 %v1152, 1.0
    %v1180 = vadd.f32 %v1154, 1.0
    %v1181 = vadd.f32 %v1156, 1.0
    %v1182 = vadd.f32 %v1158, 1.0
    %v1183 = vadd.f32 %v1160, 1.0
    %v1184 = vadd.f32 %v1162, 1.0
    %v1185 = vadd.f32 %v1164, 1.0
    %v1186 = vadd.f32 %v1166, 1.0
    %v1187 = vadd.f32 %v1168, 1.0
    %v1188 = vadd.f32 %v1170, 1.0
    %v1189 = vadd.f32 %v1172, 1.0
    %v1190 = vadd.f32 %v1174, 1.0
    %v1191 = vrcp.pop %v1175
    %v1192 = vrcp.pop %v1176
    %v1193 = vrcp.pop %v1177
    %v1194 = vrcp.pop %v1178
    %v1195 = vrcp.pop %v1179
    %v1196 = vrcp.pop %v1180
    %v1197 = vrcp.pop %v1181
    %v1198 = vrcp.pop %v1182
    %v1199 = vrcp.pop %v1183
    %v1200 = vrcp.pop %v1184
    %v1201 = vrcp.pop %v1185
    %v1202 = vrcp.pop %v1186
    %v1203 = vrcp.pop %v1187
    %v1204 = vrcp.pop %v1188
    %v1205 = vrcp.pop %v1189
    %v1206 = vrcp.pop %v1190
    %1207 = vst [vmem:[#allocation2] sm:$0xff] %v1191
    %1208 = vst [vmem:[#allocation2 + $0x8] sm:$0xff] %v1192
    %1209 = vst [vmem:[#allocation2 + $0x10] sm:$0xff] %v1193
    %1210 = vst [vmem:[#allocation2 + $0x18] sm:$0xff] %v1194
    %1211 = vst [vmem:[#allocation2 + $0x20] sm:$0xff] %v1195
    %1212 = vst [vmem:[#allocation2 + $0x28] sm:$0xff] %v1196
    %1213 = vst [vmem:[#allocation2 + $0x30] sm:$0xff] %v1197
    %1214 = vst [vmem:[#allocation2 + $0x38] sm:$0xff] %v1198
    %1215 = vst [vmem:[#allocation2 + $0x40] sm:$0xff] %v1199
    %1216 = vst [vmem:[#allocation2 + $0x48] sm:$0xff] %v1200
    %1217 = vst [vmem:[#allocation2 + $0x50] sm:$0xff] %v1201
    %1218 = vst [vmem:[#allocation2 + $0x58] sm:$0xff] %v1202
    %1219 = vst [vmem:[#allocation2 + $0x60] sm:$0xff] %v1203
    %1220 = vst [vmem:[#allocation2 + $0x68] sm:$0xff] %v1204
    %1221 = vst [vmem:[#allocation2 + $0x70] sm:$0xff] %v1205
    %1222 = vst [vmem:[#allocation2 + $0x78] sm:$0xff] %v1206
    // Predicated region
    $region38: #{tpu_custom_call.1} parent=1 // pred_check
      _
    $region39: #{tpu_custom_call.1} parent=1 // pred_check_branch
      %1224 = sbr.rel (0) target = $region41
    $region40: #{tpu_custom_call.1} parent=1 // pred_region
      %s1226 = ssub.s32 2048, 2048
      %1227 = vsyncadd [#allocation3], %s1226
      %s1228 = sshll.u32 [#allocation2], 4
      %s1229 = int_to_ptr.vmem [resolvable:$true] %s1228
      %1234 = dma.vmem_to_hbm [thread:$0]  %s1229, 2048, %s9, [#allocation3], 128, 128, 8
    $region41: #{tpu_custom_call.1} parent=1 // pred_fallthru
      _
    // Predicated region
    $region42: #{tpu_custom_call.1} parent=1 // pred_check
      _
    $region43: #{tpu_custom_call.1} parent=1 // pred_check_branch
      %1236 = sbr.rel (0) target = $region45
    $region44: #{tpu_custom_call.1} parent=1 // pred_region
      %1237 = dma.done [#allocation3], 2048
    $region45: #{tpu_custom_call.1} parent=1 // pred_fallthru
      _
    %1238 = vsyncpa [#allocation3], 1

</llo_original>
